<compile_context>
chip_gen: v5e
topology: v5e:2x2
jax: 0.10.0
libtpu: 0.0.40
codegen_flags: <defaults>
</compile_context>

<pallas_src>
import functools

import jax
import jax.numpy as jnp
from jax.experimental import pallas as pl
from jax.experimental.pallas import tpu as pltpu

_LANE = 128      # lane width (last-dim granule)
_SUBLANE = 8     # sublane granule (second-to-last dim)


def _round_up(n, m):
    return ((n + m - 1) // m) * m


def _cdiv(a, b):
    return (a + b - 1) // b


def _mlp_kernel(num_layers, discrim, *refs):
    """Fused MLP forward over one batch tile.

    refs = (x_ref, w1_ref, b1_ref, ..., wN_ref, bN_ref, o_ref, h_scratch)

    Semantics match the PyTorch module (default dropout == -1 path):
      for i in range(N): x = x @ W_i + b_i ; ReLU except last layer
      if discrim: sigmoid on the final output.

    All lane dims are zero-padded to 128 multiples in the wrapper, so padded
    columns stay exactly zero through the ReLU layers (bias padding is zero,
    ReLU(0)=0) and are sliced off after the call.
    """
    x_ref = refs[0]
    o_ref = refs[-2]
    h_ref = refs[-1]                 # VMEM staging (matmul dtype) for intermediates
    param_refs = refs[1:-2]

    # Layer 0 reads the input tile directly (no VMEM staging round-trip).
    h = x_ref[...]
    for i in range(num_layers):
        w_ref = param_refs[2 * i]
        b_ref = param_refs[2 * i + 1]
        d_in, d_out = w_ref.shape
        if i > 0:
            h = h_ref[:, :d_in]                      # already in matmul dtype
        y = jnp.dot(h.astype(w_ref.dtype), w_ref[...],
                    preferred_element_type=jnp.float32)
        y = y + b_ref[...]                           # bias add in f32 (VPU)
        if i != num_layers - 1:
            y = jnp.maximum(y, 0.0)                  # nn.ReLU, f32 in-register
            h_ref[:, :d_out] = y.astype(h_ref.dtype)  # single cast at the store
        else:
            if discrim:
                y = jax.nn.sigmoid(y)                # nn.Sigmoid when discrim=True
            o_ref[...] = y.astype(o_ref.dtype)
    # TODO(synk): dropout (module's dropout != -1 path) is not implemented.


def prepare_mlp_params(weights, biases, matmul_dtype=jnp.bfloat16):
    """One-time conversion of PyTorch-layout params to kernel layout.

    weights: list of (out_i, in_i); biases: list of (out_i,).
    Returns (w_pad, b_pad, dims, padded_dims) with weights transposed to
    (in, out), zero-padded to 128 multiples and cast to matmul_dtype
    (bf16 default: MXU peak on v5e/v6e/v7x, half the weight HBM/VMEM bytes).
    Biases stay f32.  Done once outside the hot path.
    """
    dims = [int(weights[0].shape[1])] + [int(w.shape[0]) for w in weights]
    padded = [_round_up(d, _LANE) for d in dims]
    w_pad, b_pad = [], []
    for i, (w, b) in enumerate(zip(weights, biases)):
        wt = jnp.asarray(w, jnp.float32).T                       # (in, out)
        wt = jnp.pad(wt, ((0, padded[i] - dims[i]),
                          (0, padded[i + 1] - dims[i + 1])))
        w_pad.append(wt.astype(matmul_dtype))
        bb = jnp.pad(jnp.asarray(b, jnp.float32),
                     (0, padded[i + 1] - dims[i + 1]))
        b_pad.append(bb.reshape(1, -1))                          # f32
    return w_pad, b_pad, dims, padded


def mlp_forward(x, w_pad, b_pad, dims, padded_dims, discrim=False,
                block_b=256, min_tiles=4):
    """Run the fused MLP Pallas kernel on x of shape (B, input_dim).

    block_b: max rows per batch tile (raise to 512-1024 on v5e/v6e for large
    batches; keep ~256-384 on v7x where 64 MiB VMEM is shared with the
    resident weights).  min_tiles: target minimum number of grid steps so both
    v7x TensorCores get work and x/o DMAs have something to overlap.
    """
    num_layers = len(w_pad)
    batch, in_dim = x.shape
    assert in_dim == dims[0]
    in_pad, out_pad = padded_dims[0], padded_dims[-1]
    out_dim = dims[-1]
    max_pad = max(padded_dims)
    scratch_dtype = w_pad[0].dtype

    # Batch tiling: balance tiles to minimize padding (batch=257 -> 4x72, not
    # 2x256), cap at block_b, and aim for >= min_tiles steps when batch allows.
    n_tiles = max(_cdiv(batch, block_b), min(min_tiles, _cdiv(batch, _SUBLANE)))
    tile_b = _round_up(_cdiv(batch, n_tiles), _SUBLANE)
    grid_len = _cdiv(batch, tile_b)
    batch_pad = grid_len * tile_b

    x_p = x.astype(jnp.float32)
    if (batch_pad, in_pad) != (batch, in_dim):
        x_p = jnp.pad(x_p, ((0, batch_pad - batch), (0, in_pad - in_dim)))

    operands = [x_p]
    for w, b in zip(w_pad, b_pad):
        operands.append(w)
        operands.append(b)

    kernel = functools.partial(_mlp_kernel, num_layers, bool(discrim))

    def _run(single_buffer_params):
        # Weight/bias specs: grid-invariant index_map, so the second pipeline
        # buffer is never used -> single-buffer them to halve resident VMEM
        # (matters most on v7x, 64 MiB physical).
        def resident(shape):
            if single_buffer_params:
                return pl.BlockSpec(shape, lambda i: (0, 0),
                                    pipeline_mode=pl.Buffered(1))
            return pl.BlockSpec(shape, lambda i: (0, 0))

        in_specs = [pl.BlockSpec((tile_b, in_pad), lambda i: (i, 0))]
        for w, b in zip(w_pad, b_pad):
            in_specs.append(resident(w.shape))
            in_specs.append(resident(b.shape))
        out_spec = pl.BlockSpec((tile_b, out_pad), lambda i: (i, 0))

        # Honest VMEM accounting: params * actual buffer count, double-buffered
        # x/o activation tiles, scratch, plus headroom.  Cap at 48 MiB so we
        # stay under v7x's 64 MiB physical VMEM (v5e/v6e have 128 MiB).
        buf_mult = 1 if single_buffer_params else 2
        param_bytes = sum(int(a.size) * a.dtype.itemsize for a in operands[1:])
        act_bytes = 2 * 4 * tile_b * (in_pad + out_pad)
        scratch_bytes = tile_b * max_pad * jnp.dtype(scratch_dtype).itemsize
        vmem_budget = buf_mult * param_bytes + act_bytes + scratch_bytes + (4 << 20)
        vmem_budget = int(min(max(vmem_budget, 16 << 20), 48 << 20))
        # TODO(synk): when resident weights exceed ~24-32 MiB (v7x), add an
        # N-tiled weight-streaming grid axis instead of full residency.

        return pl.pallas_call(
            kernel,
            out_shape=jax.ShapeDtypeStruct((batch_pad, out_pad), jnp.float32),
            grid=(grid_len,),
            in_specs=in_specs,
            out_specs=out_spec,
            scratch_shapes=[pltpu.VMEM((tile_b, max_pad), scratch_dtype)],
            compiler_params=pltpu.CompilerParams(
                dimension_semantics=("parallel",),   # batch tiles across TCs (v7x)
                vmem_limit_bytes=vmem_budget,
            ),
        )(*operands)

    try:
        out_p = _run(single_buffer_params=True)
    except Exception:
        # Fallback for Pallas builds that reject pipeline_mode / Buffered(1);
        # identical semantics, default double-buffered params.
        out_p = _run(single_buffer_params=False)

    return out_p[:batch, :out_dim]


def _init_linear(key, in_dim, out_dim):
    """Deterministic init mimicking nn.Linear default (uniform +-1/sqrt(in))."""
    kw, kb = jax.random.split(key)
    bound = 1.0 / jnp.sqrt(jnp.float32(in_dim))
    w = jax.random.uniform(kw, (out_dim, in_dim), jnp.float32, -bound, bound)
    b = jax.random.uniform(kb, (out_dim,), jnp.float32, -bound, bound)
    return w, b


def mlp_reference(x, weights, biases, discrim=False):
    h = x
    n = len(weights)
    for i, (w, b) in enumerate(zip(weights, biases)):
        h = h @ w.T + b
        if i != n - 1:
            h = jnp.maximum(h, 0.0)
        elif discrim:
            h = jax.nn.sigmoid(h)
    return h


if __name__ == "__main__":
    # Small shapes consistent with the module:
    # MLP(input_dim=16, output_dim=8, hidden_size=(64, 32)) -> 3 Linear layers.
    batch, input_dim, output_dim = 8, 16, 8
    hidden_size = (64, 32)
    dims = [input_dim, *hidden_size, output_dim]

    key = jax.random.PRNGKey(0)
    keys = jax.random.split(key, len(dims))  # len(dims)-1 layers + 1 for x

    weights, biases = [], []
    for i in range(len(dims) - 1):
        w, b = _init_linear(keys[i], dims[i], dims[i + 1])
        weights.append(w)
        biases.append(b)

    x = jax.random.normal(keys[-1], (batch, input_dim), jnp.float32)

    ref = mlp_reference(x, weights, biases, discrim=False)
    ref_d = mlp_reference(x, weights, biases, discrim=True)

    # f32 param path: tight-tolerance correctness check.
    w32, b32, d32, p32 = prepare_mlp_params(weights, biases,
                                            matmul_dtype=jnp.float32)
    out32 = jax.block_until_ready(
        mlp_forward(x, w32, b32, d32, p32, discrim=False))
    assert out32.shape == (batch, output_dim)
    assert jnp.allclose(out32, ref, atol=1e-5, rtol=1e-5), "mismatch (f32)"

    # Default bf16 path (MXU-peak weights, bf16 activation scratch, f32 accum):
    # looser tolerance vs the f32 reference.
    wbf, bbf, dbf, pbf = prepare_mlp_params(weights, biases)
    outbf = jax.block_until_ready(
        mlp_forward(x, wbf, bbf, dbf, pbf, discrim=False))
    assert jnp.allclose(outbf, ref, atol=1e-1, rtol=1e-1), "mismatch (bf16)"

    # discrim=True (final sigmoid) path.
    out_d = jax.block_until_ready(
        mlp_forward(x, wbf, bbf, dbf, pbf, discrim=True))
    assert jnp.allclose(out_d, ref_d, atol=1e-1, rtol=1e-1), "mismatch (discrim)"

    print("KERNEL_OK")
</pallas_src>

<mosaic_0001>
module attributes {stable_mosaic.version = 11 : i64} {
  func.func @_mlp_kernel(%arg0: i32, %arg1: memref<8x128xf32, #tpu.memory_space<vmem>>, %arg2: memref<128x128xf32, #tpu.memory_space<vmem>>, %arg3: memref<1x128xf32, #tpu.memory_space<vmem>>, %arg4: memref<128x128xf32, #tpu.memory_space<vmem>>, %arg5: memref<1x128xf32, #tpu.memory_space<vmem>>, %arg6: memref<128x128xf32, #tpu.memory_space<vmem>>, %arg7: memref<1x128xf32, #tpu.memory_space<vmem>>, %arg8: memref<8x128xf32, #tpu.memory_space<vmem>>, %arg9: memref<8x128xf32, #tpu.memory_space<vmem>>) attributes {dimension_semantics = [#tpu.dimension_semantics<parallel>], iteration_bounds = array<i64: 1>, scalar_prefetch = 0 : i64, scratch_operands = 1 : i64, tpu.core_type = #tpu.core_type<tc>, window_params = [{transform_indices = @transform_0, window_bounds = array<i64: 8, 128>}, {pipeline_mode = #tpu.pipeline_mode<synchronous>, transform_indices = @transform_1, window_bounds = array<i64: 128, 128>}, {pipeline_mode = #tpu.pipeline_mode<synchronous>, transform_indices = @transform_2, window_bounds = array<i64: 1, 128>}, {pipeline_mode = #tpu.pipeline_mode<synchronous>, transform_indices = @transform_3, window_bounds = array<i64: 128, 128>}, {pipeline_mode = #tpu.pipeline_mode<synchronous>, transform_indices = @transform_4, window_bounds = array<i64: 1, 128>}, {pipeline_mode = #tpu.pipeline_mode<synchronous>, transform_indices = @transform_5, window_bounds = array<i64: 128, 128>}, {pipeline_mode = #tpu.pipeline_mode<synchronous>, transform_indices = @transform_6, window_bounds = array<i64: 1, 128>}, {transform_indices = @transform_7, window_bounds = array<i64: 8, 128>}]} {
    %c0 = arith.constant 0 : index
    %c0_0 = arith.constant 0 : index
    %0 = vector.load %arg1[%c0, %c0_0] : memref<8x128xf32, #tpu.memory_space<vmem>>, vector<8x128xf32>
    %c0_1 = arith.constant 0 : index
    %c0_2 = arith.constant 0 : index
    %1 = vector.load %arg2[%c0_1, %c0_2] : memref<128x128xf32, #tpu.memory_space<vmem>>, vector<128x128xf32>
    %cst = arith.constant dense<0.000000e+00> : vector<8x128xf32>
    %2 = tpu.matmul %0, %1, %cst {dimension_numbers = #tpu.dot_dimension_numbers<[1], [0], [0], [1], [0, 0, 1, 1], [], []>} : vector<8x128xf32>, vector<128x128xf32>, vector<8x128xf32> -> vector<8x128xf32>
    %c0_3 = arith.constant 0 : index
    %c0_4 = arith.constant 0 : index
    %3 = vector.load %arg3[%c0_3, %c0_4] : memref<1x128xf32, #tpu.memory_space<vmem>>, vector<1x128xf32>
    %4 = vector.broadcast %3 : vector<1x128xf32> to vector<8x128xf32>
    %5 = arith.addf %2, %4 : vector<8x128xf32>
    %cst_5 = arith.constant 0.000000e+00 : f32
    %6 = vector.broadcast %cst_5 : f32 to vector<8x128xf32>
    %7 = arith.maximumf %5, %6 : vector<8x128xf32>
    %c0_6 = arith.constant 0 : index
    %c0_7 = arith.constant 0 : index
    %8 = vector.load %arg9[%c0_6, %c0_7] : memref<8x128xf32, #tpu.memory_space<vmem>>, vector<8x128xf32>
    tpu.vector_store %arg9[%c0_6, %c0_7], %7 {strides = array<i32>} : memref<8x128xf32, #tpu.memory_space<vmem>>, vector<8x128xf32>,
    %c0_8 = arith.constant 0 : index
    %c0_9 = arith.constant 0 : index
    %9 = vector.load %arg9[%c0_8, %c0_9] : memref<8x128xf32, #tpu.memory_space<vmem>>, vector<8x128xf32>
    %c0_10 = arith.constant 0 : index
    %c0_11 = arith.constant 0 : index
    %10 = vector.load %arg4[%c0_10, %c0_11] : memref<128x128xf32, #tpu.memory_space<vmem>>, vector<128x128xf32>
    %cst_12 = arith.constant dense<0.000000e+00> : vector<8x128xf32>
    %11 = tpu.matmul %9, %10, %cst_12 {dimension_numbers = #tpu.dot_dimension_numbers<[1], [0], [0], [1], [0, 0, 1, 1], [], []>} : vector<8x128xf32>, vector<128x128xf32>, vector<8x128xf32> -> vector<8x128xf32>
    %c0_13 = arith.constant 0 : index
    %c0_14 = arith.constant 0 : index
    %12 = vector.load %arg5[%c0_13, %c0_14] : memref<1x128xf32, #tpu.memory_space<vmem>>, vector<1x128xf32>
    %13 = vector.broadcast %12 : vector<1x128xf32> to vector<8x128xf32>
    %14 = arith.addf %11, %13 : vector<8x128xf32>
    %cst_15 = arith.constant 0.000000e+00 : f32
    %15 = vector.broadcast %cst_15 : f32 to vector<8x128xf32>
    %16 = arith.maximumf %14, %15 : vector<8x128xf32>
    %c0_16 = arith.constant 0 : index
    %c0_17 = arith.constant 0 : index
    %17 = vector.load %arg9[%c0_16, %c0_17] : memref<8x128xf32, #tpu.memory_space<vmem>>, vector<8x128xf32>
    tpu.vector_store %arg9[%c0_16, %c0_17], %16 {strides = array<i32>} : memref<8x128xf32, #tpu.memory_space<vmem>>, vector<8x128xf32>,
    %c0_18 = arith.constant 0 : index
    %c0_19 = arith.constant 0 : index
    %18 = vector.load %arg9[%c0_18, %c0_19] : memref<8x128xf32, #tpu.memory_space<vmem>>, vector<8x128xf32>
    %c0_20 = arith.constant 0 : index
    %c0_21 = arith.constant 0 : index
    %19 = vector.load %arg6[%c0_20, %c0_21] : memref<128x128xf32, #tpu.memory_space<vmem>>, vector<128x128xf32>
    %cst_22 = arith.constant dense<0.000000e+00> : vector<8x128xf32>
    %20 = tpu.matmul %18, %19, %cst_22 {dimension_numbers = #tpu.dot_dimension_numbers<[1], [0], [0], [1], [0, 0, 1, 1], [], []>} : vector<8x128xf32>, vector<128x128xf32>, vector<8x128xf32> -> vector<8x128xf32>
    %c0_23 = arith.constant 0 : index
    %c0_24 = arith.constant 0 : index
    %21 = vector.load %arg7[%c0_23, %c0_24] : memref<1x128xf32, #tpu.memory_space<vmem>>, vector<1x128xf32>
    %22 = vector.broadcast %21 : vector<1x128xf32> to vector<8x128xf32>
    %23 = arith.addf %20, %22 : vector<8x128xf32>
    %c0_25 = arith.constant 0 : index
    %c0_26 = arith.constant 0 : index
    %24 = vector.load %arg8[%c0_25, %c0_26] : memref<8x128xf32, #tpu.memory_space<vmem>>, vector<8x128xf32>
    tpu.vector_store %arg8[%c0_25, %c0_26], %23 {strides = array<i32>} : memref<8x128xf32, #tpu.memory_space<vmem>>, vector<8x128xf32>,
    return
  }
  func.func @transform_0(%arg0: i32) -> (i32, i32) {
    %c0_i32 = arith.constant 0 : i32
    %c0_i32_0 = arith.constant 0 : i32
    return %arg0, %c0_i32 : i32, i32
  }
  func.func @transform_1(%arg0: i32) -> (i32, i32) {
    %c0_i32 = arith.constant 0 : i32
    %c0_i32_0 = arith.constant 0 : i32
    %c0_i32_1 = arith.constant 0 : i32
    return %c0_i32, %c0_i32_0 : i32, i32
  }
  func.func @transform_2(%arg0: i32) -> (i32, i32) {
    %c0_i32 = arith.constant 0 : i32
    %c0_i32_0 = arith.constant 0 : i32
    %c0_i32_1 = arith.constant 0 : i32
    return %c0_i32, %c0_i32_0 : i32, i32
  }
  func.func @transform_3(%arg0: i32) -> (i32, i32) {
    %c0_i32 = arith.constant 0 : i32
    %c0_i32_0 = arith.constant 0 : i32
    %c0_i32_1 = arith.constant 0 : i32
    return %c0_i32, %c0_i32_0 : i32, i32
  }
  func.func @transform_4(%arg0: i32) -> (i32, i32) {
    %c0_i32 = arith.constant 0 : i32
    %c0_i32_0 = arith.constant 0 : i32
    %c0_i32_1 = arith.constant 0 : i32
    return %c0_i32, %c0_i32_0 : i32, i32
  }
  func.func @transform_5(%arg0: i32) -> (i32, i32) {
    %c0_i32 = arith.constant 0 : i32
    %c0_i32_0 = arith.constant 0 : i32
    %c0_i32_1 = arith.constant 0 : i32
    return %c0_i32, %c0_i32_0 : i32, i32
  }
  func.func @transform_6(%arg0: i32) -> (i32, i32) {
    %c0_i32 = arith.constant 0 : i32
    %c0_i32_0 = arith.constant 0 : i32
    %c0_i32_1 = arith.constant 0 : i32
    return %c0_i32, %c0_i32_0 : i32, i32
  }
  func.func @transform_7(%arg0: i32) -> (i32, i32) {
    %c0_i32 = arith.constant 0 : i32
    %c0_i32_0 = arith.constant 0 : i32
    return %arg0, %c0_i32 : i32, i32
  }
}

module attributes {stable_mosaic.version = 11 : i64} {
  func.func @_mlp_kernel(%arg0: i32, %arg1: memref<8x128xf32, #tpu.memory_space<vmem>>, %arg2: memref<128x128xf32, #tpu.memory_space<vmem>>, %arg3: memref<1x128xf32, #tpu.memory_space<vmem>>, %arg4: memref<128x128xf32, #tpu.memory_space<vmem>>, %arg5: memref<1x128xf32, #tpu.memory_space<vmem>>, %arg6: memref<128x128xf32, #tpu.memory_space<vmem>>, %arg7: memref<1x128xf32, #tpu.memory_space<vmem>>, %arg8: memref<8x128xf32, #tpu.memory_space<vmem>>, %arg9: memref<8x128xf32, #tpu.memory_space<vmem>>) attributes {dimension_semantics = [#tpu.dimension_semantics<parallel>], iteration_bounds = array<i64: 1>, scalar_prefetch = 0 : i64, scratch_operands = 1 : i64, tpu.core_type = #tpu.core_type<tc>, window_params = [{transform_indices = @transform_0, window_bounds = array<i64: 8, 128>}, {pipeline_mode = #tpu.pipeline_mode<synchronous>, transform_indices = @transform_1, window_bounds = array<i64: 128, 128>}, {pipeline_mode = #tpu.pipeline_mode<synchronous>, transform_indices = @transform_2, window_bounds = array<i64: 1, 128>}, {pipeline_mode = #tpu.pipeline_mode<synchronous>, transform_indices = @transform_3, window_bounds = array<i64: 128, 128>}, {pipeline_mode = #tpu.pipeline_mode<synchronous>, transform_indices = @transform_4, window_bounds = array<i64: 1, 128>}, {pipeline_mode = #tpu.pipeline_mode<synchronous>, transform_indices = @transform_5, window_bounds = array<i64: 128, 128>}, {pipeline_mode = #tpu.pipeline_mode<synchronous>, transform_indices = @transform_6, window_bounds = array<i64: 1, 128>}, {transform_indices = @transform_7, window_bounds = array<i64: 8, 128>}]} {
    %c0 = arith.constant 0 : index
    %c0_0 = arith.constant 0 : index
    %0 = vector.load %arg1[%c0, %c0_0] : memref<8x128xf32, #tpu.memory_space<vmem>>, vector<8x128xf32>
    %c0_1 = arith.constant 0 : index
    %c0_2 = arith.constant 0 : index
    %1 = vector.load %arg2[%c0_1, %c0_2] : memref<128x128xf32, #tpu.memory_space<vmem>>, vector<128x128xf32>
    %cst = arith.constant dense<0.000000e+00> : vector<8x128xf32>
    %2 = tpu.matmul %0, %1, %cst {dimension_numbers = #tpu.dot_dimension_numbers<[1], [0], [0], [1], [0, 0, 1, 1], [], []>} : vector<8x128xf32>, vector<128x128xf32>, vector<8x128xf32> -> vector<8x128xf32>
    %c0_3 = arith.constant 0 : index
    %c0_4 = arith.constant 0 : index
    %3 = vector.load %arg3[%c0_3, %c0_4] : memref<1x128xf32, #tpu.memory_space<vmem>>, vector<1x128xf32>
    %4 = vector.broadcast %3 : vector<1x128xf32> to vector<8x128xf32>
    %5 = arith.addf %2, %4 : vector<8x128xf32>
    %cst_5 = arith.constant 0.000000e+00 : f32
    %6 = vector.broadcast %cst_5 : f32 to vector<8x128xf32>
    %7 = arith.maximumf %5, %6 : vector<8x128xf32>
    %c0_6 = arith.constant 0 : index
    %c0_7 = arith.constant 0 : index
    %8 = vector.load %arg9[%c0_6, %c0_7] : memref<8x128xf32, #tpu.memory_space<vmem>>, vector<8x128xf32>
    tpu.vector_store %arg9[%c0_6, %c0_7], %7 {strides = array<i32>} : memref<8x128xf32, #tpu.memory_space<vmem>>, vector<8x128xf32>,
    %c0_8 = arith.constant 0 : index
    %c0_9 = arith.constant 0 : index
    %9 = vector.load %arg9[%c0_8, %c0_9] : memref<8x128xf32, #tpu.memory_space<vmem>>, vector<8x128xf32>
    %c0_10 = arith.constant 0 : index
    %c0_11 = arith.constant 0 : index
    %10 = vector.load %arg4[%c0_10, %c0_11] : memref<128x128xf32, #tpu.memory_space<vmem>>, vector<128x128xf32>
    %cst_12 = arith.constant dense<0.000000e+00> : vector<8x128xf32>
    %11 = tpu.matmul %9, %10, %cst_12 {dimension_numbers = #tpu.dot_dimension_numbers<[1], [0], [0], [1], [0, 0, 1, 1], [], []>} : vector<8x128xf32>, vector<128x128xf32>, vector<8x128xf32> -> vector<8x128xf32>
    %c0_13 = arith.constant 0 : index
    %c0_14 = arith.constant 0 : index
    %12 = vector.load %arg5[%c0_13, %c0_14] : memref<1x128xf32, #tpu.memory_space<vmem>>, vector<1x128xf32>
    %13 = vector.broadcast %12 : vector<1x128xf32> to vector<8x128xf32>
    %14 = arith.addf %11, %13 : vector<8x128xf32>
    %cst_15 = arith.constant 0.000000e+00 : f32
    %15 = vector.broadcast %cst_15 : f32 to vector<8x128xf32>
    %16 = arith.maximumf %14, %15 : vector<8x128xf32>
    %c0_16 = arith.constant 0 : index
    %c0_17 = arith.constant 0 : index
    %17 = vector.load %arg9[%c0_16, %c0_17] : memref<8x128xf32, #tpu.memory_space<vmem>>, vector<8x128xf32>
    tpu.vector_store %arg9[%c0_16, %c0_17], %16 {strides = array<i32>} : memref<8x128xf32, #tpu.memory_space<vmem>>, vector<8x128xf32>,
    %c0_18 = arith.constant 0 : index
    %c0_19 = arith.constant 0 : index
    %18 = vector.load %arg9[%c0_18, %c0_19] : memref<8x128xf32, #tpu.memory_space<vmem>>, vector<8x128xf32>
    %c0_20 = arith.constant 0 : index
    %c0_21 = arith.constant 0 : index
    %19 = vector.load %arg6[%c0_20, %c0_21] : memref<128x128xf32, #tpu.memory_space<vmem>>, vector<128x128xf32>
    %cst_22 = arith.constant dense<0.000000e+00> : vector<8x128xf32>
    %20 = tpu.matmul %18, %19, %cst_22 {dimension_numbers = #tpu.dot_dimension_numbers<[1], [0], [0], [1], [0, 0, 1, 1], [], []>} : vector<8x128xf32>, vector<128x128xf32>, vector<8x128xf32> -> vector<8x128xf32>
    %c0_23 = arith.constant 0 : index
    %c0_24 = arith.constant 0 : index
    %21 = vector.load %arg7[%c0_23, %c0_24] : memref<1x128xf32, #tpu.memory_space<vmem>>, vector<1x128xf32>
    %22 = vector.broadcast %21 : vector<1x128xf32> to vector<8x128xf32>
    %23 = arith.addf %20, %22 : vector<8x128xf32>
    %c0_25 = arith.constant 0 : index
    %c0_26 = arith.constant 0 : index
    %24 = vector.load %arg8[%c0_25, %c0_26] : memref<8x128xf32, #tpu.memory_space<vmem>>, vector<8x128xf32>
    tpu.vector_store %arg8[%c0_25, %c0_26], %23 {strides = array<i32>} : memref<8x128xf32, #tpu.memory_space<vmem>>, vector<8x128xf32>,
    return
  }
  func.func @transform_0(%arg0: i32) -> (i32, i32) {
    %c0_i32 = arith.constant 0 : i32
    %c0_i32_0 = arith.constant 0 : i32
    return %arg0, %c0_i32 : i32, i32
  }
  func.func @transform_1(%arg0: i32) -> (i32, i32) {
    %c0_i32 = arith.constant 0 : i32
    %c0_i32_0 = arith.constant 0 : i32
    %c0_i32_1 = arith.constant 0 : i32
    return %c0_i32, %c0_i32_0 : i32, i32
  }
  func.func @transform_2(%arg0: i32) -> (i32, i32) {
    %c0_i32 = arith.constant 0 : i32
    %c0_i32_0 = arith.constant 0 : i32
    %c0_i32_1 = arith.constant 0 : i32
    return %c0_i32, %c0_i32_0 : i32, i32
  }
  func.func @transform_3(%arg0: i32) -> (i32, i32) {
    %c0_i32 = arith.constant 0 : i32
    %c0_i32_0 = arith.constant 0 : i32
    %c0_i32_1 = arith.constant 0 : i32
    return %c0_i32, %c0_i32_0 : i32, i32
  }
  func.func @transform_4(%arg0: i32) -> (i32, i32) {
    %c0_i32 = arith.constant 0 : i32
    %c0_i32_0 = arith.constant 0 : i32
    %c0_i32_1 = arith.constant 0 : i32
    return %c0_i32, %c0_i32_0 : i32, i32
  }
  func.func @transform_5(%arg0: i32) -> (i32, i32) {
    %c0_i32 = arith.constant 0 : i32
    %c0_i32_0 = arith.constant 0 : i32
    %c0_i32_1 = arith.constant 0 : i32
    return %c0_i32, %c0_i32_0 : i32, i32
  }
  func.func @transform_6(%arg0: i32) -> (i32, i32) {
    %c0_i32 = arith.constant 0 : i32
    %c0_i32_0 = arith.constant 0 : i32
    %c0_i32_1 = arith.constant 0 : i32
    return %c0_i32, %c0_i32_0 : i32, i32
  }
  func.func @transform_7(%arg0: i32) -> (i32, i32) {
    %c0_i32 = arith.constant 0 : i32
    %c0_i32_0 = arith.constant 0 : i32
    return %arg0, %c0_i32 : i32, i32
  }
}

</mosaic_0001>

<llo_original>
// kernel: tpu_custom_call.1
$region0: #{tpu_custom_call.1}
  #allocation0 [shape = 'u32[]', space=smem, size = 0x4, offset = 0x4, fixed_abs, tag = 'smem constant byte address 0x4 - core index']
  #allocation1 [shape = 'u32[72,128]{1,0:T(1,128)}', space=vmem, size = 0x9000, scoped, tag = 'internal scratch']
  #allocation2 [shape = 'f32[8,128]{1,0:T(8,128)}', space=vmem, size = 0x1000, scoped, tag = 'scratch operand']
  %s0 = inlined_call_operand.hbm [shape: f32[8,128], index: 0, kind: input, shape index: {}]
  %s1 = inlined_call_operand.hbm [shape: f32[128,128], index: 1, kind: input, shape index: {}]
  %s2 = inlined_call_operand.vmem [shape: f32[1,128], index: 2, kind: input, shape index: {}]
  %s3 = inlined_call_operand.hbm [shape: f32[128,128], index: 3, kind: input, shape index: {}]
  %s4 = inlined_call_operand.vmem [shape: f32[1,128], index: 4, kind: input, shape index: {}]
  %s5 = inlined_call_operand.hbm [shape: f32[128,128], index: 5, kind: input, shape index: {}]
  %s6 = inlined_call_operand.vmem [shape: f32[1,128], index: 6, kind: input, shape index: {}]
  %s7 = inlined_call_operand.hbm [shape: f32[8,128], index: 7, kind: output, shape index: {}]
  %s8 = sld [smem:[#allocation0]]
  $region54: #{tpu_custom_call.1} parent=0
    _
  %s10 = ssub.s32 1, %s8
  %s11 = scalar_select 0, %s10, %s8
  $region1: #{tpu_custom_call.1} parent=0
    #allocation3 [shape = 'u8[4096]{0}', space=vmem, size = 0x1000, scoped, tag = 'input window, operand 0, single buffered']
    #allocation4 [shape = 's32[1]{0}', space=sflag, size = 0x4, scoped, tag = 'scoped memory for tpu_custom_call.1']
    #allocation5 [shape = 's32[1]{0}', space=sflag, size = 0x4, scoped, tag = 'scoped memory for tpu_custom_call.1']
    #allocation6 [shape = 'u8[65536]{0}', space=vmem, size = 0x10000, scoped, tag = 'input window, operand 1, single buffered']
    #allocation7 [shape = 's32[1]{0}', space=sflag, size = 0x4, scoped, tag = 'scoped memory for tpu_custom_call.1']
    #allocation8 [shape = 'u8[65536]{0}', space=vmem, size = 0x10000, scoped, tag = 'input window, operand 3, single buffered']
    #allocation9 [shape = 'u8[65536]{0}', space=vmem, size = 0x10000, scoped, tag = 'input window, operand 5, single buffered']
    #allocation10 [shape = 's32[1]{0}', space=sflag, size = 0x4, scoped, tag = 'scoped memory for tpu_custom_call.1']
    #allocation11 [shape = 'u8[4096]{0}', space=vmem, size = 0x1000, scoped, tag = 'output window, operand 0, single buffered']
    %12 = vsyncpa [#allocation4], 0
    %13 = vsyncpa [#allocation7], 0
    %14 = vsyncpa [#allocation10], 0
    %15 = vsyncpa [#allocation5], 0
    // Predicated region
    $region2: #{tpu_custom_call.1} parent=1 // pred_check
      _
    $region3: #{tpu_custom_call.1} parent=1 // pred_check_branch
      %17 = sbr.rel (0) target = $region5
    $region4: #{tpu_custom_call.1} parent=1 // pred_region
      %19 = vsyncadd [#allocation4], 0
      %s21 = sshll.u32 %s0, 4
      %s22 = int_to_ptr.hbm [resolvable:$true] %s21
      %s23 = sshll.u32 [#allocation3], 4
      %s24 = int_to_ptr.vmem [resolvable:$true] %s23
      %26 = dma.hbm_to_vmem [thread:$0]  %s22, 128, %s24, [#allocation4]
    $region5: #{tpu_custom_call.1} parent=1 // pred_fallthru
      _
    // Predicated region
    $region6: #{tpu_custom_call.1} parent=1 // pred_check
      _
    $region7: #{tpu_custom_call.1} parent=1 // pred_check_branch
      %28 = sbr.rel (0) target = $region9
    $region8: #{tpu_custom_call.1} parent=1 // pred_region
      %30 = vsyncadd [#allocation7], 0
      %s31 = sshll.u32 %s1, 4
      %s32 = int_to_ptr.hbm [resolvable:$true] %s31
      %s33 = sshll.u32 [#allocation6], 4
      %s34 = int_to_ptr.vmem [resolvable:$true] %s33
      %39 = dma.hbm_to_vmem [thread:$0]  %s32, 2048, %s34, [#allocation7], 128, 128, 8
    $region9: #{tpu_custom_call.1} parent=1 // pred_fallthru
      _
    // Predicated region
    $region10: #{tpu_custom_call.1} parent=1 // pred_check
      _
    $region11: #{tpu_custom_call.1} parent=1 // pred_check_branch
      %41 = sbr.rel (0) target = $region13
    $region12: #{tpu_custom_call.1} parent=1 // pred_region
      _
    $region13: #{tpu_custom_call.1} parent=1 // pred_fallthru
      _
    // Predicated region
    $region14: #{tpu_custom_call.1} parent=1 // pred_check
      _
    $region15: #{tpu_custom_call.1} parent=1 // pred_check_branch
      %43 = sbr.rel (0) target = $region17
    $region16: #{tpu_custom_call.1} parent=1 // pred_region
      %45 = vsyncadd [#allocation7], 0
      %s46 = sshll.u32 %s3, 4
      %s47 = int_to_ptr.hbm [resolvable:$true] %s46
      %s48 = sshll.u32 [#allocation8], 4
      %s49 = int_to_ptr.vmem [resolvable:$true] %s48
      %54 = dma.hbm_to_vmem [thread:$0]  %s47, 2048, %s49, [#allocation7], 128, 128, 8
    $region17: #{tpu_custom_call.1} parent=1 // pred_fallthru
      _
    // Predicated region
    $region18: #{tpu_custom_call.1} parent=1 // pred_check
      _
    $region19: #{tpu_custom_call.1} parent=1 // pred_check_branch
      %56 = sbr.rel (0) target = $region21
    $region20: #{tpu_custom_call.1} parent=1 // pred_region
      _
    $region21: #{tpu_custom_call.1} parent=1 // pred_fallthru
      _
    // Predicated region
    $region22: #{tpu_custom_call.1} parent=1 // pred_check
      _
    $region23: #{tpu_custom_call.1} parent=1 // pred_check_branch
      %58 = sbr.rel (0) target = $region25
    $region24: #{tpu_custom_call.1} parent=1 // pred_region
      %60 = vsyncadd [#allocation10], 0
      %s61 = sshll.u32 %s5, 4
      %s62 = int_to_ptr.hbm [resolvable:$true] %s61
      %s63 = sshll.u32 [#allocation9], 4
      %s64 = int_to_ptr.vmem [resolvable:$true] %s63
      %69 = dma.hbm_to_vmem [thread:$0]  %s62, 2048, %s64, [#allocation10], 128, 128, 8
    $region25: #{tpu_custom_call.1} parent=1 // pred_fallthru
      _
    // Predicated region
    $region26: #{tpu_custom_call.1} parent=1 // pred_check
      _
    $region27: #{tpu_custom_call.1} parent=1 // pred_check_branch
      %71 = sbr.rel (0) target = $region29
    $region28: #{tpu_custom_call.1} parent=1 // pred_region
      _
    $region29: #{tpu_custom_call.1} parent=1 // pred_fallthru
      _
    // Predicated region
    $region30: #{tpu_custom_call.1} parent=1 // pred_check
      _
    $region31: #{tpu_custom_call.1} parent=1 // pred_check_branch
      %73 = sbr.rel (0) target = $region33
    $region32: #{tpu_custom_call.1} parent=1 // pred_region
      %75 = dma.done [#allocation4], 128
    $region33: #{tpu_custom_call.1} parent=1 // pred_fallthru
      _
    // Predicated region
    $region34: #{tpu_custom_call.1} parent=1 // pred_check
      _
    $region35: #{tpu_custom_call.1} parent=1 // pred_check_branch
      %77 = sbr.rel (0) target = $region37
    $region36: #{tpu_custom_call.1} parent=1 // pred_region
      %79 = dma.done [#allocation7], 2048
    $region37: #{tpu_custom_call.1} parent=1 // pred_fallthru
      _
    // Predicated region
    $region38: #{tpu_custom_call.1} parent=1 // pred_check
      _
    $region39: #{tpu_custom_call.1} parent=1 // pred_check_branch
      %81 = sbr.rel (0) target = $region41
    $region40: #{tpu_custom_call.1} parent=1 // pred_region
      %83 = dma.done [#allocation7], 2048
    $region41: #{tpu_custom_call.1} parent=1 // pred_fallthru
      _
    // Predicated region
    $region42: #{tpu_custom_call.1} parent=1 // pred_check
      _
    $region43: #{tpu_custom_call.1} parent=1 // pred_check_branch
      %85 = sbr.rel (0) target = $region45
    $region44: #{tpu_custom_call.1} parent=1 // pred_region
      %87 = dma.done [#allocation10], 2048
    $region45: #{tpu_custom_call.1} parent=1 // pred_fallthru
      _
    %v88 = vld [vmem:[#allocation3] sm:$0xff]
    %v89 = vld [vmem:[#allocation6] sm:$0xff]
    %v90 = vld [vmem:[#allocation6 + $0x8] sm:$0xff]
    %v91 = vld [vmem:[#allocation6 + $0x10] sm:$0xff]
    %v92 = vld [vmem:[#allocation6 + $0x18] sm:$0xff]
    %v93 = vld [vmem:[#allocation6 + $0x20] sm:$0xff]
    %v94 = vld [vmem:[#allocation6 + $0x28] sm:$0xff]
    %v95 = vld [vmem:[#allocation6 + $0x30] sm:$0xff]
    %v96 = vld [vmem:[#allocation6 + $0x38] sm:$0xff]
    %v97 = vld [vmem:[#allocation6 + $0x40] sm:$0xff]
    %v98 = vld [vmem:[#allocation6 + $0x48] sm:$0xff]
    %v99 = vld [vmem:[#allocation6 + $0x50] sm:$0xff]
    %v100 = vld [vmem:[#allocation6 + $0x58] sm:$0xff]
    %v101 = vld [vmem:[#allocation6 + $0x60] sm:$0xff]
    %v102 = vld [vmem:[#allocation6 + $0x68] sm:$0xff]
    %v103 = vld [vmem:[#allocation6 + $0x70] sm:$0xff]
    %v104 = vld [vmem:[#allocation6 + $0x78] sm:$0xff]
    %v105 = vld [vmem:[%s2] sm:$0x1]
    %v107 = vperm.slane %v105, 0
    %109 = vmatpush.msra.mxu0 %v104
    %110 = vmatpush.msra.mxu0 %v103
    %111 = vmatpush.msra.mxu0 %v102
    %112 = vmatpush.msra.mxu0 %v101
    %113 = vmatpush.msra.mxu0 %v100
    %114 = vmatpush.msra.mxu0 %v99
    %115 = vmatpush.msra.mxu0 %v98
    %116 = vmatpush.msra.mxu0 %v97
    %117 = vmatpush.msra.mxu0 %v96
    %118 = vmatpush.msra.mxu0 %v95
    %119 = vmatpush.msra.mxu0 %v94
    %120 = vmatpush.msra.mxu0 %v93
    %121 = vmatpush.msra.mxu0 %v92
    %122 = vmatpush.msra.mxu0 %v91
    %123 = vmatpush.msra.mxu0 %v90
    %124 = vmatpush.msra.mxu0 %v89
    %125 = vmatmul.f32.gmra.mxu0 %v88
    %v126 = vpop.f32.mrf.mxu0
    %v127 = vadd.f32 %v107, %v126
    %128 = vdwg.mxu0
    %v129 = vmax.f32 %v127, 0.0
    %130 = vst [vmem:[#allocation2] sm:$0xff] %v129
    %v131 = vld [vmem:[#allocation2] sm:$0xff]
    %v132 = vld [vmem:[#allocation8] sm:$0xff]
    %v133 = vld [vmem:[#allocation8 + $0x8] sm:$0xff]
    %v134 = vld [vmem:[#allocation8 + $0x10] sm:$0xff]
    %v135 = vld [vmem:[#allocation8 + $0x18] sm:$0xff]
    %v136 = vld [vmem:[#allocation8 + $0x20] sm:$0xff]
    %v137 = vld [vmem:[#allocation8 + $0x28] sm:$0xff]
    %v138 = vld [vmem:[#allocation8 + $0x30] sm:$0xff]
    %v139 = vld [vmem:[#allocation8 + $0x38] sm:$0xff]
    %v140 = vld [vmem:[#allocation8 + $0x40] sm:$0xff]
    %v141 = vld [vmem:[#allocation8 + $0x48] sm:$0xff]
    %v142 = vld [vmem:[#allocation8 + $0x50] sm:$0xff]
    %v143 = vld [vmem:[#allocation8 + $0x58] sm:$0xff]
    %v144 = vld [vmem:[#allocation8 + $0x60] sm:$0xff]
    %v145 = vld [vmem:[#allocation8 + $0x68] sm:$0xff]
    %v146 = vld [vmem:[#allocation8 + $0x70] sm:$0xff]
    %v147 = vld [vmem:[#allocation8 + $0x78] sm:$0xff]
    %v148 = vld [vmem:[%s4] sm:$0x1]
    %v150 = vperm.slane %v148, 0
    %152 = vmatpush.msra.mxu0 %v147
    %153 = vmatpush.msra.mxu0 %v146
    %154 = vmatpush.msra.mxu0 %v145
    %155 = vmatpush.msra.mxu0 %v144
    %156 = vmatpush.msra.mxu0 %v143
    %157 = vmatpush.msra.mxu0 %v142
    %158 = vmatpush.msra.mxu0 %v141
    %159 = vmatpush.msra.mxu0 %v140
    %160 = vmatpush.msra.mxu0 %v139
    %161 = vmatpush.msra.mxu0 %v138
    %162 = vmatpush.msra.mxu0 %v137
    %163 = vmatpush.msra.mxu0 %v136
    %164 = vmatpush.msra.mxu0 %v135
    %165 = vmatpush.msra.mxu0 %v134
    %166 = vmatpush.msra.mxu0 %v133
    %167 = vmatpush.msra.mxu0 %v132
    %168 = vmatmul.f32.gmra.mxu0 %v131
    %v169 = vpop.f32.mrf.mxu0
    %v170 = vadd.f32 %v150, %v169
    %171 = vdwg.mxu0
    %v172 = vmax.f32 %v170, 0.0
    %173 = vst [vmem:[#allocation2] sm:$0xff] %v172
    %v174 = vld [vmem:[#allocation2] sm:$0xff]
    %v175 = vld [vmem:[#allocation9] sm:$0xff]
    %v176 = vld [vmem:[#allocation9 + $0x8] sm:$0xff]
    %v177 = vld [vmem:[#allocation9 + $0x10] sm:$0xff]
    %v178 = vld [vmem:[#allocation9 + $0x18] sm:$0xff]
    %v179 = vld [vmem:[#allocation9 + $0x20] sm:$0xff]
    %v180 = vld [vmem:[#allocation9 + $0x28] sm:$0xff]
    %v181 = vld [vmem:[#allocation9 + $0x30] sm:$0xff]
    %v182 = vld [vmem:[#allocation9 + $0x38] sm:$0xff]
    %v183 = vld [vmem:[#allocation9 + $0x40] sm:$0xff]
    %v184 = vld [vmem:[#allocation9 + $0x48] sm:$0xff]
    %v185 = vld [vmem:[#allocation9 + $0x50] sm:$0xff]
    %v186 = vld [vmem:[#allocation9 + $0x58] sm:$0xff]
    %v187 = vld [vmem:[#allocation9 + $0x60] sm:$0xff]
    %v188 = vld [vmem:[#allocation9 + $0x68] sm:$0xff]
    %v189 = vld [vmem:[#allocation9 + $0x70] sm:$0xff]
    %v190 = vld [vmem:[#allocation9 + $0x78] sm:$0xff]
    %v191 = vld [vmem:[%s6] sm:$0x1]
    %v193 = vperm.slane %v191, 0
    %195 = vmatpush.msra.mxu0 %v190
    %196 = vmatpush.msra.mxu0 %v189
    %197 = vmatpush.msra.mxu0 %v188
    %198 = vmatpush.msra.mxu0 %v187
    %199 = vmatpush.msra.mxu0 %v186
    %200 = vmatpush.msra.mxu0 %v185
    %201 = vmatpush.msra.mxu0 %v184
    %202 = vmatpush.msra.mxu0 %v183
    %203 = vmatpush.msra.mxu0 %v182
    %204 = vmatpush.msra.mxu0 %v181
    %205 = vmatpush.msra.mxu0 %v180
    %206 = vmatpush.msra.mxu0 %v179
    %207 = vmatpush.msra.mxu0 %v178
    %208 = vmatpush.msra.mxu0 %v177
    %209 = vmatpush.msra.mxu0 %v176
    %210 = vmatpush.msra.mxu0 %v175
    %211 = vmatmul.f32.gmra.mxu0 %v174
    %v212 = vpop.f32.mrf.mxu0
    %v213 = vadd.f32 %v193, %v212
    %214 = vdwg.mxu0
    %215 = vst [vmem:[#allocation11] sm:$0xff] %v213
    // Predicated region
    $region46: #{tpu_custom_call.1} parent=1 // pred_check
      _
    $region47: #{tpu_custom_call.1} parent=1 // pred_check_branch
      %217 = sbr.rel (0) target = $region49
    $region48: #{tpu_custom_call.1} parent=1 // pred_region
      %219 = vsyncadd [#allocation5], 0
      %s221 = sshll.u32 [#allocation11], 4
      %s222 = int_to_ptr.vmem [resolvable:$true] %s221
      %s223 = sshll.u32 %s7, 4
      %s224 = int_to_ptr.hbm [resolvable:$true] %s223
      %226 = dma.vmem_to_hbm [thread:$0]  %s222, 128, %s224, [#allocation5]
    $region49: #{tpu_custom_call.1} parent=1 // pred_fallthru
      _
    // Predicated region
    $region50: #{tpu_custom_call.1} parent=1 // pred_check
      _
    $region51: #{tpu_custom_call.1} parent=1 // pred_check_branch
      %228 = sbr.rel (0) target = $region53
    $region52: #{tpu_custom_call.1} parent=1 // pred_region
      %230 = dma.done [#allocation5], 128
    $region53: #{tpu_custom_call.1} parent=1 // pred_fallthru
      _
    %231 = vsyncpa [#allocation4], 1
    %232 = vsyncpa [#allocation7], 1
    %233 = vsyncpa [#allocation10], 1
    %234 = vsyncpa [#allocation5], 1

// kernel: tpu_custom_call.1
$region0: #{tpu_custom_call.1}
  #allocation0 [shape = 'u32[]', space=smem, size = 0x4, offset = 0x4, fixed_abs, tag = 'smem constant byte address 0x4 - core index']
  #allocation1 [shape = 'u32[72,128]{1,0:T(1,128)}', space=vmem, size = 0x9000, scoped, tag = 'internal scratch']
  #allocation2 [shape = 'f32[8,128]{1,0:T(8,128)}', space=vmem, size = 0x1000, scoped, tag = 'scratch operand']
  %s0 = inlined_call_operand.hbm [shape: f32[8,128], index: 0, kind: input, shape index: {}]
  %s1 = inlined_call_operand.hbm [shape: f32[128,128], index: 1, kind: input, shape index: {}]
  %s2 = inlined_call_operand.vmem [shape: f32[1,128], index: 2, kind: input, shape index: {}]
  %s3 = inlined_call_operand.hbm [shape: f32[128,128], index: 3, kind: input, shape index: {}]
  %s4 = inlined_call_operand.vmem [shape: f32[1,128], index: 4, kind: input, shape index: {}]
  %s5 = inlined_call_operand.hbm [shape: f32[128,128], index: 5, kind: input, shape index: {}]
  %s6 = inlined_call_operand.vmem [shape: f32[1,128], index: 6, kind: input, shape index: {}]
  %s7 = inlined_call_operand.hbm [shape: f32[8,128], index: 7, kind: output, shape index: {}]
  %s8 = sld [smem:[#allocation0]]
  $region54: #{tpu_custom_call.1} parent=0
    _
  %s10 = ssub.s32 1, %s8
  %s11 = scalar_select 0, %s10, %s8
  $region1: #{tpu_custom_call.1} parent=0
    #allocation3 [shape = 'u8[4096]{0}', space=vmem, size = 0x1000, scoped, tag = 'input window, operand 0, single buffered']
    #allocation4 [shape = 's32[1]{0}', space=sflag, size = 0x4, scoped, tag = 'scoped memory for tpu_custom_call.1']
    #allocation5 [shape = 's32[1]{0}', space=sflag, size = 0x4, scoped, tag = 'scoped memory for tpu_custom_call.1']
    #allocation6 [shape = 'u8[65536]{0}', space=vmem, size = 0x10000, scoped, tag = 'input window, operand 1, single buffered']
    #allocation7 [shape = 's32[1]{0}', space=sflag, size = 0x4, scoped, tag = 'scoped memory for tpu_custom_call.1']
    #allocation8 [shape = 'u8[65536]{0}', space=vmem, size = 0x10000, scoped, tag = 'input window, operand 3, single buffered']
    #allocation9 [shape = 'u8[65536]{0}', space=vmem, size = 0x10000, scoped, tag = 'input window, operand 5, single buffered']
    #allocation10 [shape = 's32[1]{0}', space=sflag, size = 0x4, scoped, tag = 'scoped memory for tpu_custom_call.1']
    #allocation11 [shape = 'u8[4096]{0}', space=vmem, size = 0x1000, scoped, tag = 'output window, operand 0, single buffered']
    %12 = vsyncpa [#allocation4], 0
    %13 = vsyncpa [#allocation7], 0
    %14 = vsyncpa [#allocation10], 0
    %15 = vsyncpa [#allocation5], 0
    // Predicated region
    $region2: #{tpu_custom_call.1} parent=1 // pred_check
      _
    $region3: #{tpu_custom_call.1} parent=1 // pred_check_branch
      %17 = sbr.rel (0) target = $region5
    $region4: #{tpu_custom_call.1} parent=1 // pred_region
      %19 = vsyncadd [#allocation4], 0
      %s21 = sshll.u32 %s0, 4
      %s22 = int_to_ptr.hbm [resolvable:$true] %s21
      %s23 = sshll.u32 [#allocation3], 4
      %s24 = int_to_ptr.vmem [resolvable:$true] %s23
      %26 = dma.hbm_to_vmem [thread:$0]  %s22, 128, %s24, [#allocation4]
    $region5: #{tpu_custom_call.1} parent=1 // pred_fallthru
      _
    // Predicated region
    $region6: #{tpu_custom_call.1} parent=1 // pred_check
      _
    $region7: #{tpu_custom_call.1} parent=1 // pred_check_branch
      %28 = sbr.rel (0) target = $region9
    $region8: #{tpu_custom_call.1} parent=1 // pred_region
      %30 = vsyncadd [#allocation7], 0
      %s31 = sshll.u32 %s1, 4
      %s32 = int_to_ptr.hbm [resolvable:$true] %s31
      %s33 = sshll.u32 [#allocation6], 4
      %s34 = int_to_ptr.vmem [resolvable:$true] %s33
      %39 = dma.hbm_to_vmem [thread:$0]  %s32, 2048, %s34, [#allocation7], 128, 128, 8
    $region9: #{tpu_custom_call.1} parent=1 // pred_fallthru
      _
    // Predicated region
    $region10: #{tpu_custom_call.1} parent=1 // pred_check
      _
    $region11: #{tpu_custom_call.1} parent=1 // pred_check_branch
      %41 = sbr.rel (0) target = $region13
    $region12: #{tpu_custom_call.1} parent=1 // pred_region
      _
    $region13: #{tpu_custom_call.1} parent=1 // pred_fallthru
      _
    // Predicated region
    $region14: #{tpu_custom_call.1} parent=1 // pred_check
      _
    $region15: #{tpu_custom_call.1} parent=1 // pred_check_branch
      %43 = sbr.rel (0) target = $region17
    $region16: #{tpu_custom_call.1} parent=1 // pred_region
      %45 = vsyncadd [#allocation7], 0
      %s46 = sshll.u32 %s3, 4
      %s47 = int_to_ptr.hbm [resolvable:$true] %s46
      %s48 = sshll.u32 [#allocation8], 4
      %s49 = int_to_ptr.vmem [resolvable:$true] %s48
      %54 = dma.hbm_to_vmem [thread:$0]  %s47, 2048, %s49, [#allocation7], 128, 128, 8
    $region17: #{tpu_custom_call.1} parent=1 // pred_fallthru
      _
    // Predicated region
    $region18: #{tpu_custom_call.1} parent=1 // pred_check
      _
    $region19: #{tpu_custom_call.1} parent=1 // pred_check_branch
      %56 = sbr.rel (0) target = $region21
    $region20: #{tpu_custom_call.1} parent=1 // pred_region
      _
    $region21: #{tpu_custom_call.1} parent=1 // pred_fallthru
      _
    // Predicated region
    $region22: #{tpu_custom_call.1} parent=1 // pred_check
      _
    $region23: #{tpu_custom_call.1} parent=1 // pred_check_branch
      %58 = sbr.rel (0) target = $region25
    $region24: #{tpu_custom_call.1} parent=1 // pred_region
      %60 = vsyncadd [#allocation10], 0
      %s61 = sshll.u32 %s5, 4
      %s62 = int_to_ptr.hbm [resolvable:$true] %s61
      %s63 = sshll.u32 [#allocation9], 4
      %s64 = int_to_ptr.vmem [resolvable:$true] %s63
      %69 = dma.hbm_to_vmem [thread:$0]  %s62, 2048, %s64, [#allocation10], 128, 128, 8
    $region25: #{tpu_custom_call.1} parent=1 // pred_fallthru
      _
    // Predicated region
    $region26: #{tpu_custom_call.1} parent=1 // pred_check
      _
    $region27: #{tpu_custom_call.1} parent=1 // pred_check_branch
      %71 = sbr.rel (0) target = $region29
    $region28: #{tpu_custom_call.1} parent=1 // pred_region
      _
    $region29: #{tpu_custom_call.1} parent=1 // pred_fallthru
      _
    // Predicated region
    $region30: #{tpu_custom_call.1} parent=1 // pred_check
      _
    $region31: #{tpu_custom_call.1} parent=1 // pred_check_branch
      %73 = sbr.rel (0) target = $region33
    $region32: #{tpu_custom_call.1} parent=1 // pred_region
      %75 = dma.done [#allocation4], 128
    $region33: #{tpu_custom_call.1} parent=1 // pred_fallthru
      _
    // Predicated region
    $region34: #{tpu_custom_call.1} parent=1 // pred_check
      _
    $region35: #{tpu_custom_call.1} parent=1 // pred_check_branch
      %77 = sbr.rel (0) target = $region37
    $region36: #{tpu_custom_call.1} parent=1 // pred_region
      %79 = dma.done [#allocation7], 2048
    $region37: #{tpu_custom_call.1} parent=1 // pred_fallthru
      _
    // Predicated region
    $region38: #{tpu_custom_call.1} parent=1 // pred_check
      _
    $region39: #{tpu_custom_call.1} parent=1 // pred_check_branch
      %81 = sbr.rel (0) target = $region41
    $region40: #{tpu_custom_call.1} parent=1 // pred_region
      %83 = dma.done [#allocation7], 2048
    $region41: #{tpu_custom_call.1} parent=1 // pred_fallthru
      _
    // Predicated region
    $region42: #{tpu_custom_call.1} parent=1 // pred_check
      _
    $region43: #{tpu_custom_call.1} parent=1 // pred_check_branch
      %85 = sbr.rel (0) target = $region45
    $region44: #{tpu_custom_call.1} parent=1 // pred_region
      %87 = dma.done [#allocation10], 2048
    $region45: #{tpu_custom_call.1} parent=1 // pred_fallthru
      _
    %v88 = vld [vmem:[#allocation3] sm:$0xff]
    %v89 = vld [vmem:[#allocation6] sm:$0xff]
    %v90 = vld [vmem:[#allocation6 + $0x8] sm:$0xff]
    %v91 = vld [vmem:[#allocation6 + $0x10] sm:$0xff]
    %v92 = vld [vmem:[#allocation6 + $0x18] sm:$0xff]
    %v93 = vld [vmem:[#allocation6 + $0x20] sm:$0xff]
    %v94 = vld [vmem:[#allocation6 + $0x28] sm:$0xff]
    %v95 = vld [vmem:[#allocation6 + $0x30] sm:$0xff]
    %v96 = vld [vmem:[#allocation6 + $0x38] sm:$0xff]
    %v97 = vld [vmem:[#allocation6 + $0x40] sm:$0xff]
    %v98 = vld [vmem:[#allocation6 + $0x48] sm:$0xff]
    %v99 = vld [vmem:[#allocation6 + $0x50] sm:$0xff]
    %v100 = vld [vmem:[#allocation6 + $0x58] sm:$0xff]
    %v101 = vld [vmem:[#allocation6 + $0x60] sm:$0xff]
    %v102 = vld [vmem:[#allocation6 + $0x68] sm:$0xff]
    %v103 = vld [vmem:[#allocation6 + $0x70] sm:$0xff]
    %v104 = vld [vmem:[#allocation6 + $0x78] sm:$0xff]
    %v105 = vld [vmem:[%s2] sm:$0x1]
    %v107 = vperm.slane %v105, 0
    %109 = vmatpush.msra.mxu0 %v104
    %110 = vmatpush.msra.mxu0 %v103
    %111 = vmatpush.msra.mxu0 %v102
    %112 = vmatpush.msra.mxu0 %v101
    %113 = vmatpush.msra.mxu0 %v100
    %114 = vmatpush.msra.mxu0 %v99
    %115 = vmatpush.msra.mxu0 %v98
    %116 = vmatpush.msra.mxu0 %v97
    %117 = vmatpush.msra.mxu0 %v96
    %118 = vmatpush.msra.mxu0 %v95
    %119 = vmatpush.msra.mxu0 %v94
    %120 = vmatpush.msra.mxu0 %v93
    %121 = vmatpush.msra.mxu0 %v92
    %122 = vmatpush.msra.mxu0 %v91
    %123 = vmatpush.msra.mxu0 %v90
    %124 = vmatpush.msra.mxu0 %v89
    %125 = vmatmul.f32.gmra.mxu0 %v88
    %v126 = vpop.f32.mrf.mxu0
    %v127 = vadd.f32 %v107, %v126
    %128 = vdwg.mxu0
    %v129 = vmax.f32 %v127, 0.0
    %130 = vst [vmem:[#allocation2] sm:$0xff] %v129
    %v131 = vld [vmem:[#allocation2] sm:$0xff]
    %v132 = vld [vmem:[#allocation8] sm:$0xff]
    %v133 = vld [vmem:[#allocation8 + $0x8] sm:$0xff]
    %v134 = vld [vmem:[#allocation8 + $0x10] sm:$0xff]
    %v135 = vld [vmem:[#allocation8 + $0x18] sm:$0xff]
    %v136 = vld [vmem:[#allocation8 + $0x20] sm:$0xff]
    %v137 = vld [vmem:[#allocation8 + $0x28] sm:$0xff]
    %v138 = vld [vmem:[#allocation8 + $0x30] sm:$0xff]
    %v139 = vld [vmem:[#allocation8 + $0x38] sm:$0xff]
    %v140 = vld [vmem:[#allocation8 + $0x40] sm:$0xff]
    %v141 = vld [vmem:[#allocation8 + $0x48] sm:$0xff]
    %v142 = vld [vmem:[#allocation8 + $0x50] sm:$0xff]
    %v143 = vld [vmem:[#allocation8 + $0x58] sm:$0xff]
    %v144 = vld [vmem:[#allocation8 + $0x60] sm:$0xff]
    %v145 = vld [vmem:[#allocation8 + $0x68] sm:$0xff]
    %v146 = vld [vmem:[#allocation8 + $0x70] sm:$0xff]
    %v147 = vld [vmem:[#allocation8 + $0x78] sm:$0xff]
    %v148 = vld [vmem:[%s4] sm:$0x1]
    %v150 = vperm.slane %v148, 0
    %152 = vmatpush.msra.mxu0 %v147
    %153 = vmatpush.msra.mxu0 %v146
    %154 = vmatpush.msra.mxu0 %v145
    %155 = vmatpush.msra.mxu0 %v144
    %156 = vmatpush.msra.mxu0 %v143
    %157 = vmatpush.msra.mxu0 %v142
    %158 = vmatpush.msra.mxu0 %v141
    %159 = vmatpush.msra.mxu0 %v140
    %160 = vmatpush.msra.mxu0 %v139
    %161 = vmatpush.msra.mxu0 %v138
    %162 = vmatpush.msra.mxu0 %v137
    %163 = vmatpush.msra.mxu0 %v136
    %164 = vmatpush.msra.mxu0 %v135
    %165 = vmatpush.msra.mxu0 %v134
    %166 = vmatpush.msra.mxu0 %v133
    %167 = vmatpush.msra.mxu0 %v132
    %168 = vmatmul.f32.gmra.mxu0 %v131
    %v169 = vpop.f32.mrf.mxu0
    %v170 = vadd.f32 %v150, %v169
    %171 = vdwg.mxu0
    %v172 = vmax.f32 %v170, 0.0
    %173 = vst [vmem:[#allocation2] sm:$0xff] %v172
    %v174 = vld [vmem:[#allocation2] sm:$0xff]
    %v175 = vld [vmem:[#allocation9] sm:$0xff]
    %v176 = vld [vmem:[#allocation9 + $0x8] sm:$0xff]
    %v177 = vld [vmem:[#allocation9 + $0x10] sm:$0xff]
    %v178 = vld [vmem:[#allocation9 + $0x18] sm:$0xff]
    %v179 = vld [vmem:[#allocation9 + $0x20] sm:$0xff]
    %v180 = vld [vmem:[#allocation9 + $0x28] sm:$0xff]
    %v181 = vld [vmem:[#allocation9 + $0x30] sm:$0xff]
    %v182 = vld [vmem:[#allocation9 + $0x38] sm:$0xff]
    %v183 = vld [vmem:[#allocation9 + $0x40] sm:$0xff]
    %v184 = vld [vmem:[#allocation9 + $0x48] sm:$0xff]
    %v185 = vld [vmem:[#allocation9 + $0x50] sm:$0xff]
    %v186 = vld [vmem:[#allocation9 + $0x58] sm:$0xff]
    %v187 = vld [vmem:[#allocation9 + $0x60] sm:$0xff]
    %v188 = vld [vmem:[#allocation9 + $0x68] sm:$0xff]
    %v189 = vld [vmem:[#allocation9 + $0x70] sm:$0xff]
    %v190 = vld [vmem:[#allocation9 + $0x78] sm:$0xff]
    %v191 = vld [vmem:[%s6] sm:$0x1]
    %v193 = vperm.slane %v191, 0
    %195 = vmatpush.msra.mxu0 %v190
    %196 = vmatpush.msra.mxu0 %v189
    %197 = vmatpush.msra.mxu0 %v188
    %198 = vmatpush.msra.mxu0 %v187
    %199 = vmatpush.msra.mxu0 %v186
    %200 = vmatpush.msra.mxu0 %v185
    %201 = vmatpush.msra.mxu0 %v184
    %202 = vmatpush.msra.mxu0 %v183
    %203 = vmatpush.msra.mxu0 %v182
    %204 = vmatpush.msra.mxu0 %v181
    %205 = vmatpush.msra.mxu0 %v180
    %206 = vmatpush.msra.mxu0 %v179
    %207 = vmatpush.msra.mxu0 %v178
    %208 = vmatpush.msra.mxu0 %v177
    %209 = vmatpush.msra.mxu0 %v176
    %210 = vmatpush.msra.mxu0 %v175
    %211 = vmatmul.f32.gmra.mxu0 %v174
    %v212 = vpop.f32.mrf.mxu0
    %v213 = vadd.f32 %v193, %v212
    %214 = vdwg.mxu0
    %215 = vst [vmem:[#allocation11] sm:$0xff] %v213
    // Predicated region
    $region46: #{tpu_custom_call.1} parent=1 // pred_check
      _
    $region47: #{tpu_custom_call.1} parent=1 // pred_check_branch
      %217 = sbr.rel (0) target = $region49
    $region48: #{tpu_custom_call.1} parent=1 // pred_region
      %219 = vsyncadd [#allocation5], 0
      %s221 = sshll.u32 [#allocation11], 4
      %s222 = int_to_ptr.vmem [resolvable:$true] %s221
      %s223 = sshll.u32 %s7, 4
      %s224 = int_to_ptr.hbm [resolvable:$true] %s223
      %226 = dma.vmem_to_hbm [thread:$0]  %s222, 128, %s224, [#allocation5]
    $region49: #{tpu_custom_call.1} parent=1 // pred_fallthru
      _
    // Predicated region
    $region50: #{tpu_custom_call.1} parent=1 // pred_check
      _
    $region51: #{tpu_custom_call.1} parent=1 // pred_check_branch
      %228 = sbr.rel (0) target = $region53
    $region52: #{tpu_custom_call.1} parent=1 // pred_region
      %230 = dma.done [#allocation5], 128
    $region53: #{tpu_custom_call.1} parent=1 // pred_fallthru
      _
    %231 = vsyncpa [#allocation4], 1
    %232 = vsyncpa [#allocation7], 1
    %233 = vsyncpa [#allocation10], 1
    %234 = vsyncpa [#allocation5], 1

</llo_original>
